<compile_context>
chip_gen: v6e
topology: v6e:2x2x1
jax: 0.10.0
libtpu: 0.0.40
codegen_flags: <defaults>
</compile_context>

<pallas_src>
import jax
import jax.numpy as jnp
from jax import lax
from jax.experimental import pallas as pl
from jax.experimental.pallas import tpu as pltpu


_STATIC_UNROLL = 8      # <= this many T-chunks: static slices (best lowering)
_CHUNK = 512            # T streaming chunk (multiple of 128) for long T


# ----------------------------------------------------------------------------
# Hardware sizing helpers
# ----------------------------------------------------------------------------

def _vmem_capacity_bytes():
    """Physical VMEM per TensorCore; conservative fallback = v7x (64 MiB)."""
    try:
        info = pltpu.get_tpu_info()
        for attr in ("vmem_capacity_bytes", "vmem_size_bytes", "vmem_bytes"):
            v = getattr(info, attr, None)
            if v:
                return int(v)
    except Exception:
        pass
    return 64 << 20


def _pick_bt(B, per_row_bytes, tile_budget_bytes, min_steps):
    """Largest divisor of B such that one (bt, C, T) tile fits the per-tile
    budget and the grid has >= min_steps steps (pipeline overlap / megacore)."""
    target = max(1, tile_budget_bytes // max(per_row_bytes, 1))
    target = min(target, B)
    if B >= min_steps:
        target = min(target, B // min_steps)
    target = max(target, 1)
    bt = 1
    for d in range(1, target + 1):
        if B % d == 0:
            bt = d
    return bt


# ----------------------------------------------------------------------------
# Main (single-call) path: one (Bt, C, T) batch slab per grid step
# ----------------------------------------------------------------------------

def _se_kernel_factory(chunk):
    """x_ref:(Bt,C,T) native dtype, invlen_ref:(Bt,1,1) f32, wt_ref:(C,C) f32
    (pre-transposed, in x out), b_ref:(1,C) f32, o_ref:(Bt,C,T) native dtype."""

    def kernel(x_ref, invlen_ref, wt_ref, b_ref, o_ref):
        Bt, C, T = x_ref.shape
        n_full = T // chunk
        rem = T - n_full * chunk

        # ---- pass 1: pooled f32 sum over T, chunk by chunk ------------------
        acc = jnp.zeros((Bt, C), jnp.float32)
        if n_full > 0:
            if n_full <= _STATIC_UNROLL:
                for i in range(n_full):           # static slice starts
                    xf = x_ref[:, :, i * chunk:(i + 1) * chunk].astype(jnp.float32)
                    acc = acc + jnp.sum(xf, axis=2)
            else:
                def sum_body(i, a):
                    start = pl.multiple_of(i * chunk, chunk)
                    xf = x_ref[:, :, pl.ds(start, chunk)].astype(jnp.float32)
                    return a + jnp.sum(xf, axis=2)
                acc = lax.fori_loop(0, n_full, sum_body, acc)
        if rem > 0:
            tail = x_ref[:, :, n_full * chunk:T].astype(jnp.float32)
            acc = acc + jnp.sum(tail, axis=2)

        # ---- gate: lane-dense (Bt,C)@(C,C) matmul + bias + sigmoid ----------
        pooled = acc * invlen_ref[...][:, :, 0]                       # (Bt, C)
        y = jnp.dot(pooled, wt_ref[...],
                    preferred_element_type=jnp.float32) + b_ref[...]
        gate = jax.nn.sigmoid(y).astype(o_ref.dtype)                  # native dtype

        # ---- pass 2: gated residual multiply in native dtype ----------------
        if n_full > 0:
            if n_full <= _STATIC_UNROLL:
                for i in range(n_full):
                    sl = slice(i * chunk, (i + 1) * chunk)
                    o_ref[:, :, sl] = x_ref[:, :, sl] * gate[:, :, None]
            else:
                def mul_body(i, carry):
                    start = pl.multiple_of(i * chunk, chunk)
                    o_ref[:, :, pl.ds(start, chunk)] = (
                        x_ref[:, :, pl.ds(start, chunk)] * gate[:, :, None])
                    return carry
                lax.fori_loop(0, n_full, mul_body, 0)
        if rem > 0:
            o_ref[:, :, n_full * chunk:T] = (
                x_ref[:, :, n_full * chunk:T] * gate[:, :, None])

    return kernel


# ----------------------------------------------------------------------------
# Long-T fallback: two pallas_calls (T-tiled gate reduction, then multiply)
# ----------------------------------------------------------------------------

def _gate_kernel_factory(T_total, tT):
    masked = (T_total % tT) != 0

    def kernel(x_ref, invlen_ref, wt_ref, b_ref, gate_ref, acc_ref):
        k = pl.program_id(1)

        @pl.when(k == 0)
        def _():
            acc_ref[...] = jnp.zeros_like(acc_ref)

        xf = x_ref[...].astype(jnp.float32)                           # (bt,C,tT)
        if masked:
            col = k * tT + lax.broadcasted_iota(jnp.int32, (1, 1, tT), 2)
            xf = jnp.where(col < T_total, xf, 0.0)                    # mask OOB pad
        acc_ref[...] += jnp.sum(xf, axis=2)

        @pl.when(k == pl.num_programs(1) - 1)
        def _():
            pooled = acc_ref[...] * invlen_ref[...][:, :, 0]          # (bt, C)
            y = jnp.dot(pooled, wt_ref[...],
                        preferred_element_type=jnp.float32) + b_ref[...]
            gate_ref[...] = jax.nn.sigmoid(y)[:, None, :]             # (bt,1,C) f32

    return kernel


def _mul_kernel(x_ref, gate_ref, o_ref):
    g = gate_ref[...][:, 0, :].astype(o_ref.dtype)                    # (bt, C)
    o_ref[...] = x_ref[...] * g[:, :, None]


def _contextnet_lse_split(x, inv_len, wt, b2, capacity, stream_budget):
    B, C, T = x.shape
    itemsize = jnp.dtype(x.dtype).itemsize

    # T tile: multiple of 128 (or all of T when T <= 128), sized to the budget.
    if T <= 128:
        tT = T
    else:
        max_tT = max(128, (stream_budget // (4 * C * itemsize)) // 128 * 128)
        tT = max(128, min(max_tT, (T // 128) * 128, 2048))
    # Batch tile: divisor of B such that 4 streaming tiles fit the budget.
    limit = max(1, stream_budget // (4 * C * tT * itemsize))
    bt = 1
    for d in range(1, min(B, limit) + 1):
        if B % d == 0:
            bt = d

    grid = (B // bt, pl.cdiv(T, tT))
    tile = bt * C * tT * itemsize
    needed = 4 * tile + 2 * C * C * 4 + 8 * C * 4 + (4 << 20)
    vmem_limit = int(min(max(needed, 16 << 20), int(capacity * 0.75)))

    def cparams(sem):
        return pltpu.CompilerParams(dimension_semantics=sem,
                                    vmem_limit_bytes=vmem_limit)

    gates = pl.pallas_call(
        _gate_kernel_factory(T, tT),
        out_shape=jax.ShapeDtypeStruct((B, 1, C), jnp.float32),
        grid_spec=pltpu.PrefetchScalarGridSpec(
            num_scalar_prefetch=0,
            grid=grid,
            in_specs=[
                pl.BlockSpec((bt, C, tT), lambda i, k: (i, 0, k)),    # x tile
                pl.BlockSpec((bt, 1, 1), lambda i, k: (i, 0, 0)),     # 1/len
                pl.BlockSpec((C, C), lambda i, k: (0, 0)),            # W^T
                pl.BlockSpec((1, C), lambda i, k: (0, 0)),            # bias
            ],
            out_specs=pl.BlockSpec((bt, 1, C), lambda i, k: (i, 0, 0)),
            scratch_shapes=[pltpu.VMEM((bt, C), jnp.float32)],
        ),
        compiler_params=cparams(("parallel", "arbitrary")),
    )(x, inv_len, wt, b2)

    return pl.pallas_call(
        _mul_kernel,
        out_shape=jax.ShapeDtypeStruct((B, C, T), x.dtype),
        grid_spec=pltpu.PrefetchScalarGridSpec(
            num_scalar_prefetch=0,
            grid=grid,
            in_specs=[
                pl.BlockSpec((bt, C, tT), lambda i, k: (i, 0, k)),
                pl.BlockSpec((bt, 1, C), lambda i, k: (i, 0, 0)),
            ],
            out_specs=pl.BlockSpec((bt, C, tT), lambda i, k: (i, 0, k)),
        ),
        compiler_params=cparams(("parallel", "parallel")),
    )(x, gates)


# ----------------------------------------------------------------------------
# Public wrapper
# ----------------------------------------------------------------------------

def contextnet_lse(x, input_lengths, weight, bias, *,
                   donate_x=False, force_split=False):
    """x: (B, C, T); input_lengths: (B,) int; weight: (C, C) [out x in]; bias: (C,)."""
    B, C, T = x.shape
    itemsize = jnp.dtype(x.dtype).itemsize
    per_row = C * T * itemsize

    capacity = _vmem_capacity_bytes()
    # Total budget for the 4 streaming x/o buffers (double-buffered in + out).
    stream_budget = min(48 << 20, capacity // 2)
    tile_budget = stream_budget // 4
    # v7x (64 MiB VMEM) has 2 TensorCores: keep >= 2 grid steps per core so the
    # software pipeline overlaps DMA with compute on both cores.
    min_steps = 4 if capacity <= (64 << 20) else 2

    wt = weight.astype(jnp.float32).T                     # (C_in, C_out), resident
    b2 = bias.astype(jnp.float32).reshape(1, C)           # lane layout
    inv_len = (1.0 / input_lengths.astype(jnp.float32)).reshape(B, 1, 1)

    if force_split or per_row > tile_budget:
        # A single batch row no longer fits the streaming budget: T-tiled path.
        return _contextnet_lse_split(x, inv_len, wt, b2, capacity, stream_budget)

    bt = _pick_bt(B, per_row, tile_budget, min_steps)
    grid = B // bt
    slab = bt * per_row
    needed = 4 * slab + 2 * C * C * 4 + 4 * C * 4 + (4 << 20)
    vmem_limit = int(min(max(needed, 16 << 20), int(capacity * 0.75)))
    chunk = T if T <= _CHUNK else _CHUNK

    def build(single_buffer_consts):
        const_kw = dict(pipeline_mode=pl.Buffered(1)) if single_buffer_consts else {}
        grid_spec = pltpu.PrefetchScalarGridSpec(
            num_scalar_prefetch=0,
            grid=(grid,),
            in_specs=[
                pl.BlockSpec((bt, C, T), lambda i: (i, 0, 0)),        # x slab
                pl.BlockSpec((bt, 1, 1), lambda i: (i, 0, 0)),        # 1/len
                pl.BlockSpec((C, C), lambda i: (0, 0), **const_kw),   # W^T resident
                pl.BlockSpec((1, C), lambda i: (0, 0), **const_kw),   # bias resident
            ],
            out_specs=pl.BlockSpec((bt, C, T), lambda i: (i, 0, 0)),
        )
        return pl.pallas_call(
            _se_kernel_factory(chunk),
            out_shape=jax.ShapeDtypeStruct((B, C, T), x.dtype),
            grid_spec=grid_spec,
            compiler_params=pltpu.CompilerParams(
                dimension_semantics=("parallel",),
                vmem_limit_bytes=vmem_limit,
            ),
            input_output_aliases={0: 0} if donate_x else {},
        )

    try:
        return build(True)(x, inv_len, wt, b2)
    except Exception:
        # pipeline_mode=pl.Buffered(1) unsupported on this jax version -> plain specs.
        return build(False)(x, inv_len, wt, b2)


# ----------------------------------------------------------------------------
# Pure-JAX reference matching the PyTorch forward exactly (unmasked sum)
# ----------------------------------------------------------------------------

def _reference(x, input_lengths, weight, bias):
    pooled = jnp.sum(x, axis=2) / input_lengths[:, None].astype(x.dtype)   # (B, C)
    y = pooled @ weight.T + bias                                           # (B, C)
    gate = jax.nn.sigmoid(y)[:, :, None]                                   # (B, C, 1)
    return gate * x


if __name__ == "__main__":
    # Small shapes consistent with the module: dim (channels) = 32, seq = 16, batch = 4.
    B, C, T = 4, 32, 16
    key = jax.random.PRNGKey(0)
    kx, kw, kb, kl = jax.random.split(key, 4)

    x = jax.random.normal(kx, (B, C, T), dtype=jnp.float32)

    # Deterministic nn.Linear-style init: U(-1/sqrt(dim), 1/sqrt(dim))
    bound = 1.0 / (C ** 0.5)
    weight = jax.random.uniform(kw, (C, C), minval=-bound, maxval=bound, dtype=jnp.float32)
    bias = jax.random.uniform(kb, (C,), minval=-bound, maxval=bound, dtype=jnp.float32)

    input_lengths = jax.random.randint(kl, (B,), minval=T // 2, maxval=T + 1).astype(jnp.int32)

    ref = _reference(x, input_lengths, weight, bias)

    # Main (single-call) path.
    out = jax.block_until_ready(contextnet_lse(x, input_lengths, weight, bias))
    assert out.shape == (B, C, T)
    assert out.dtype == x.dtype
    assert jnp.allclose(out, ref, atol=1e-5, rtol=1e-5), "mismatch vs reference (main path)"

    # Long-T fallback path (two pallas_calls), exercised at small shapes.
    out_split = jax.block_until_ready(
        contextnet_lse(x, input_lengths, weight, bias, force_split=True))
    assert out_split.shape == (B, C, T)
    assert out_split.dtype == x.dtype
    assert jnp.allclose(out_split, ref, atol=1e-5, rtol=1e-5), "mismatch vs reference (split path)"

    print("KERNEL_OK")
</pallas_src>

<mosaic_0001>
module attributes {stable_mosaic.version = 11 : i64} {
  func.func @kernel(%arg0: i32, %arg1: memref<1x32x16xf32, #tpu.memory_space<vmem>>, %arg2: memref<1x1x1xf32, #tpu.memory_space<vmem>>, %arg3: memref<32x32xf32, #tpu.memory_space<vmem>>, %arg4: memref<1x32xf32, #tpu.memory_space<vmem>>, %arg5: memref<1x32x16xf32, #tpu.memory_space<vmem>>) attributes {dimension_semantics = [#tpu.dimension_semantics<parallel>], iteration_bounds = array<i64: 4>, scalar_prefetch = 0 : i64, scratch_operands = 0 : i64, tpu.core_type = #tpu.core_type<tc>, window_params = [{transform_indices = @transform_0, window_bounds = array<i64: 1, 32, 16>}, {transform_indices = @transform_1, window_bounds = array<i64: 1, 1, 1>}, {pipeline_mode = #tpu.pipeline_mode<synchronous>, transform_indices = @transform_2, window_bounds = array<i64: 32, 32>}, {pipeline_mode = #tpu.pipeline_mode<synchronous>, transform_indices = @transform_3, window_bounds = array<i64: 1, 32>}, {transform_indices = @transform_4, window_bounds = array<i64: 1, 32, 16>}]} {
    %cst = arith.constant 0.000000e+00 : f32
    %0 = vector.broadcast %cst : f32 to vector<1x32xf32>
    %c0 = arith.constant 0 : index
    %c0_0 = arith.constant 0 : index
    %c0_1 = arith.constant 0 : index
    %1 = vector.load %arg1[%c0, %c0_0, %c0_1] : memref<1x32x16xf32, #tpu.memory_space<vmem>>, vector<1x32x16xf32>
    %cst_2 = arith.constant dense<0.000000e+00> : vector<1x32xf32>
    %2 = vector.multi_reduction <add>, %1, %cst_2 [2] : vector<1x32x16xf32> to vector<1x32xf32>
    %3 = arith.addf %0, %2 : vector<1x32xf32>
    %c0_3 = arith.constant 0 : index
    %c0_4 = arith.constant 0 : index
    %c0_5 = arith.constant 0 : index
    %4 = vector.load %arg2[%c0_3, %c0_4, %c0_5] : memref<1x1x1xf32, #tpu.memory_space<vmem>>, vector<1x1x1xf32>
    %5 = vector.shape_cast %4 : vector<1x1x1xf32> to vector<1x1xf32>
    %6 = vector.broadcast %5 : vector<1x1xf32> to vector<1x32xf32>
    %7 = arith.mulf %3, %6 : vector<1x32xf32>
    %c0_6 = arith.constant 0 : index
    %c0_7 = arith.constant 0 : index
    %8 = vector.load %arg3[%c0_6, %c0_7] : memref<32x32xf32, #tpu.memory_space<vmem>>, vector<32x32xf32>
    %cst_8 = arith.constant dense<0.000000e+00> : vector<1x32xf32>
    %9 = tpu.matmul %7, %8, %cst_8 {dimension_numbers = #tpu.dot_dimension_numbers<[1], [0], [0], [1], [0, 0, 1, 1], [], []>} : vector<1x32xf32>, vector<32x32xf32>, vector<1x32xf32> -> vector<1x32xf32>
    %c0_9 = arith.constant 0 : index
    %c0_10 = arith.constant 0 : index
    %10 = vector.load %arg4[%c0_9, %c0_10] : memref<1x32xf32, #tpu.memory_space<vmem>>, vector<1x32xf32>
    %11 = arith.addf %9, %10 : vector<1x32xf32>
    %12 = arith.negf %11 : vector<1x32xf32>
    %13 = math.exp %12 : vector<1x32xf32>
    %cst_11 = arith.constant 1.000000e+00 : f32
    %14 = vector.broadcast %cst_11 : f32 to vector<1x32xf32>
    %15 = arith.addf %14, %13 : vector<1x32xf32>
    %16 = arith.divf %14, %15 : vector<1x32xf32>
    %c0_12 = arith.constant 0 : index
    %c0_13 = arith.constant 0 : index
    %c0_14 = arith.constant 0 : index
    %17 = vector.load %arg1[%c0_12, %c0_13, %c0_14] : memref<1x32x16xf32, #tpu.memory_space<vmem>>, vector<1x32x16xf32>
    %18 = vector.shape_cast %16 : vector<1x32xf32> to vector<1x32x1xf32>
    %19 = vector.broadcast %18 : vector<1x32x1xf32> to vector<1x32x16xf32>
    %20 = arith.mulf %17, %19 : vector<1x32x16xf32>
    %c0_15 = arith.constant 0 : index
    %c0_16 = arith.constant 0 : index
    %c0_17 = arith.constant 0 : index
    %21 = vector.load %arg5[%c0_15, %c0_16, %c0_17] : memref<1x32x16xf32, #tpu.memory_space<vmem>>, vector<1x32x16xf32>
    tpu.vector_store %arg5[%c0_15, %c0_16, %c0_17], %20 {strides = array<i32>} : memref<1x32x16xf32, #tpu.memory_space<vmem>>, vector<1x32x16xf32>,
    return
  }
  func.func @transform_0(%arg0: i32) -> (i32, i32, i32) {
    %c0_i32 = arith.constant 0 : i32
    %c0_i32_0 = arith.constant 0 : i32
    %c0_i32_1 = arith.constant 0 : i32
    return %arg0, %c0_i32, %c0_i32_0 : i32, i32, i32
  }
  func.func @transform_1(%arg0: i32) -> (i32, i32, i32) {
    %c0_i32 = arith.constant 0 : i32
    %c0_i32_0 = arith.constant 0 : i32
    %c0_i32_1 = arith.constant 0 : i32
    return %arg0, %c0_i32, %c0_i32_0 : i32, i32, i32
  }
  func.func @transform_2(%arg0: i32) -> (i32, i32) {
    %c0_i32 = arith.constant 0 : i32
    %c0_i32_0 = arith.constant 0 : i32
    %c0_i32_1 = arith.constant 0 : i32
    return %c0_i32, %c0_i32_0 : i32, i32
  }
  func.func @transform_3(%arg0: i32) -> (i32, i32) {
    %c0_i32 = arith.constant 0 : i32
    %c0_i32_0 = arith.constant 0 : i32
    %c0_i32_1 = arith.constant 0 : i32
    return %c0_i32, %c0_i32_0 : i32, i32
  }
  func.func @transform_4(%arg0: i32) -> (i32, i32, i32) {
    %c0_i32 = arith.constant 0 : i32
    %c0_i32_0 = arith.constant 0 : i32
    %c0_i32_1 = arith.constant 0 : i32
    return %arg0, %c0_i32, %c0_i32_0 : i32, i32, i32
  }
}

module attributes {stable_mosaic.version = 11 : i64} {
  func.func @kernel(%arg0: i32, %arg1: memref<1x32x16xf32, #tpu.memory_space<vmem>>, %arg2: memref<1x1x1xf32, #tpu.memory_space<vmem>>, %arg3: memref<32x32xf32, #tpu.memory_space<vmem>>, %arg4: memref<1x32xf32, #tpu.memory_space<vmem>>, %arg5: memref<1x32x16xf32, #tpu.memory_space<vmem>>) attributes {dimension_semantics = [#tpu.dimension_semantics<parallel>], iteration_bounds = array<i64: 4>, scalar_prefetch = 0 : i64, scratch_operands = 0 : i64, tpu.core_type = #tpu.core_type<tc>, window_params = [{transform_indices = @transform_0, window_bounds = array<i64: 1, 32, 16>}, {transform_indices = @transform_1, window_bounds = array<i64: 1, 1, 1>}, {pipeline_mode = #tpu.pipeline_mode<synchronous>, transform_indices = @transform_2, window_bounds = array<i64: 32, 32>}, {pipeline_mode = #tpu.pipeline_mode<synchronous>, transform_indices = @transform_3, window_bounds = array<i64: 1, 32>}, {transform_indices = @transform_4, window_bounds = array<i64: 1, 32, 16>}]} {
    %cst = arith.constant 0.000000e+00 : f32
    %0 = vector.broadcast %cst : f32 to vector<1x32xf32>
    %c0 = arith.constant 0 : index
    %c0_0 = arith.constant 0 : index
    %c0_1 = arith.constant 0 : index
    %1 = vector.load %arg1[%c0, %c0_0, %c0_1] : memref<1x32x16xf32, #tpu.memory_space<vmem>>, vector<1x32x16xf32>
    %cst_2 = arith.constant dense<0.000000e+00> : vector<1x32xf32>
    %2 = vector.multi_reduction <add>, %1, %cst_2 [2] : vector<1x32x16xf32> to vector<1x32xf32>
    %3 = arith.addf %0, %2 : vector<1x32xf32>
    %c0_3 = arith.constant 0 : index
    %c0_4 = arith.constant 0 : index
    %c0_5 = arith.constant 0 : index
    %4 = vector.load %arg2[%c0_3, %c0_4, %c0_5] : memref<1x1x1xf32, #tpu.memory_space<vmem>>, vector<1x1x1xf32>
    %5 = vector.shape_cast %4 : vector<1x1x1xf32> to vector<1x1xf32>
    %6 = vector.broadcast %5 : vector<1x1xf32> to vector<1x32xf32>
    %7 = arith.mulf %3, %6 : vector<1x32xf32>
    %c0_6 = arith.constant 0 : index
    %c0_7 = arith.constant 0 : index
    %8 = vector.load %arg3[%c0_6, %c0_7] : memref<32x32xf32, #tpu.memory_space<vmem>>, vector<32x32xf32>
    %cst_8 = arith.constant dense<0.000000e+00> : vector<1x32xf32>
    %9 = tpu.matmul %7, %8, %cst_8 {dimension_numbers = #tpu.dot_dimension_numbers<[1], [0], [0], [1], [0, 0, 1, 1], [], []>} : vector<1x32xf32>, vector<32x32xf32>, vector<1x32xf32> -> vector<1x32xf32>
    %c0_9 = arith.constant 0 : index
    %c0_10 = arith.constant 0 : index
    %10 = vector.load %arg4[%c0_9, %c0_10] : memref<1x32xf32, #tpu.memory_space<vmem>>, vector<1x32xf32>
    %11 = arith.addf %9, %10 : vector<1x32xf32>
    %12 = arith.negf %11 : vector<1x32xf32>
    %13 = math.exp %12 : vector<1x32xf32>
    %cst_11 = arith.constant 1.000000e+00 : f32
    %14 = vector.broadcast %cst_11 : f32 to vector<1x32xf32>
    %15 = arith.addf %14, %13 : vector<1x32xf32>
    %16 = arith.divf %14, %15 : vector<1x32xf32>
    %c0_12 = arith.constant 0 : index
    %c0_13 = arith.constant 0 : index
    %c0_14 = arith.constant 0 : index
    %17 = vector.load %arg1[%c0_12, %c0_13, %c0_14] : memref<1x32x16xf32, #tpu.memory_space<vmem>>, vector<1x32x16xf32>
    %18 = vector.shape_cast %16 : vector<1x32xf32> to vector<1x32x1xf32>
    %19 = vector.broadcast %18 : vector<1x32x1xf32> to vector<1x32x16xf32>
    %20 = arith.mulf %17, %19 : vector<1x32x16xf32>
    %c0_15 = arith.constant 0 : index
    %c0_16 = arith.constant 0 : index
    %c0_17 = arith.constant 0 : index
    %21 = vector.load %arg5[%c0_15, %c0_16, %c0_17] : memref<1x32x16xf32, #tpu.memory_space<vmem>>, vector<1x32x16xf32>
    tpu.vector_store %arg5[%c0_15, %c0_16, %c0_17], %20 {strides = array<i32>} : memref<1x32x16xf32, #tpu.memory_space<vmem>>, vector<1x32x16xf32>,
    return
  }
  func.func @transform_0(%arg0: i32) -> (i32, i32, i32) {
    %c0_i32 = arith.constant 0 : i32
    %c0_i32_0 = arith.constant 0 : i32
    %c0_i32_1 = arith.constant 0 : i32
    return %arg0, %c0_i32, %c0_i32_0 : i32, i32, i32
  }
  func.func @transform_1(%arg0: i32) -> (i32, i32, i32) {
    %c0_i32 = arith.constant 0 : i32
    %c0_i32_0 = arith.constant 0 : i32
    %c0_i32_1 = arith.constant 0 : i32
    return %arg0, %c0_i32, %c0_i32_0 : i32, i32, i32
  }
  func.func @transform_2(%arg0: i32) -> (i32, i32) {
    %c0_i32 = arith.constant 0 : i32
    %c0_i32_0 = arith.constant 0 : i32
    %c0_i32_1 = arith.constant 0 : i32
    return %c0_i32, %c0_i32_0 : i32, i32
  }
  func.func @transform_3(%arg0: i32) -> (i32, i32) {
    %c0_i32 = arith.constant 0 : i32
    %c0_i32_0 = arith.constant 0 : i32
    %c0_i32_1 = arith.constant 0 : i32
    return %c0_i32, %c0_i32_0 : i32, i32
  }
  func.func @transform_4(%arg0: i32) -> (i32, i32, i32) {
    %c0_i32 = arith.constant 0 : i32
    %c0_i32_0 = arith.constant 0 : i32
    %c0_i32_1 = arith.constant 0 : i32
    return %arg0, %c0_i32, %c0_i32_0 : i32, i32, i32
  }
}

</mosaic_0001>

<llo_original>
// kernel: tpu_custom_call.1
$region0: #{tpu_custom_call.1}
  #allocation0 [shape = 'u32[]', space=smem, size = 0x4, offset = 0x4, fixed_abs, tag = 'smem constant byte address 0x4 - core index']
  #allocation1 [shape = 'u32[144,128]{1,0:T(1,128)}', space=vmem, size = 0x12000, scoped, tag = 'internal scratch']
  %s0 = inlined_call_operand.vmem [shape: f32[4,32,16], index: 0, kind: input, shape index: {}]
  %s1 = inlined_call_operand.vmem [shape: f32[4,1,1], index: 1, kind: input, shape index: {}]
  %s2 = inlined_call_operand.vmem [shape: f32[32,32], index: 2, kind: input, shape index: {}]
  %s3 = inlined_call_operand.vmem [shape: f32[1,32], index: 3, kind: input, shape index: {}]
  %s4 = inlined_call_operand.vmem [shape: f32[4,32,16], index: 4, kind: output, shape index: {}]
  %s5 = sld [smem:[#allocation0]]
  $region49: #{tpu_custom_call.1} parent=0
    _
  %s7 = ssub.s32 1, %s5
  %s8 = scalar_select 0, %s7, %s5
  loop: start=0, step=1, limit=6
  $region2: #{tpu_custom_call.1} parent=0 // loop_pre_header
    _
  $region3: #{tpu_custom_call.1} parent=0 // loop_header
    %s10 = sphi 0, %s14
    %p11 = scmp.ge.s32.totalorder %s10, 6
    %s20 = sphi 0, %s22
    %s23 = sphi 0, %s20
    %s24 = sphi 0, %s23
    %s40 = sphi 0, %s24
    %s46 = sphi 0, %s48
    %s49 = sphi 0, %s46
    %s50 = sphi 0, %s49
    %s66 = sphi 0, %s50
    %s70 = sphi 0, %s70
    %s72 = sphi 0, %s70
    %s73 = sphi 0, %s72
    %s87 = sphi 0, %s73
    %s91 = sphi 0, %s91
    %s93 = sphi 0, %s91
    %s94 = sphi 0, %s93
    %s108 = sphi 0, %s94
    %s114 = sphi 0, %s116
    %s117 = sphi 0, %s114
    %s118 = sphi 0, %s117
    %s134 = sphi 0, %s118
  $region4: #{tpu_custom_call.1} parent=0 // loop_header_branch
    %13 = sbr.rel (%p11) target = $region8
  $region5: #{tpu_custom_call.1} parent=0 // loop_body
    %s15 = ssub.s32 %s10, 1
    %s16 = ssub.s32 %s10, 2
    %s17 = sadd.s32 %s10, 1
    %s18 = ssub.s32 %s10, %s17
    %p19 = scmp.eq.s32.totalorder %s18, 0
    %s21 = sadd.s32 %s20, 1
    %s22 = scalar_select %p19, %s20, %s21
    %p25 = pneg %p19
    %p26 = scmp.eq.s32.totalorder %s10, 3
    %p27 = por %p25, %p26
    %p28 = scmp.ne.s32.totalorder %s20, %s23
    %p29 = scmp.eq.s32.totalorder %s10, 0
    %p30 = por %p28, %p29
    %p31 = scmp.ne.s32.totalorder %s20, %s23
    %p32 = scmp.eq.s32.totalorder %s15, 3
    %p33 = por %p31, %p32
    %p34 = scmp.ne.s32.totalorder %s23, %s24
    %p35 = scmp.eq.s32.totalorder %s15, 0
    %p36 = por %p34, %p35
    %p37 = scmp.ne.s32.totalorder %s23, %s24
    %p38 = scmp.eq.s32.totalorder %s16, 3
    %p39 = por %p37, %p38
    %p41 = scmp.ne.s32.totalorder %s24, %s40
    %p42 = scmp.eq.s32.totalorder %s16, 0
    %p43 = por %p41, %p42
    %s44 = ssub.s32 %s10, %s17
    %p45 = scmp.eq.s32.totalorder %s44, 0
    %s47 = sadd.s32 %s46, 1
    %s48 = scalar_select %p45, %s46, %s47
    %p51 = pneg %p45
    %p52 = scmp.eq.s32.totalorder %s10, 3
    %p53 = por %p51, %p52
    %p54 = scmp.ne.s32.totalorder %s46, %s49
    %p55 = scmp.eq.s32.totalorder %s10, 0
    %p56 = por %p54, %p55
    %p57 = scmp.ne.s32.totalorder %s46, %s49
    %p58 = scmp.eq.s32.totalorder %s15, 3
    %p59 = por %p57, %p58
    %p60 = scmp.ne.s32.totalorder %s49, %s50
    %p61 = scmp.eq.s32.totalorder %s15, 0
    %p62 = por %p60, %p61
    %p63 = scmp.ne.s32.totalorder %s49, %s50
    %p64 = scmp.eq.s32.totalorder %s16, 3
    %p65 = por %p63, %p64
    %p67 = scmp.ne.s32.totalorder %s50, %s66
    %p68 = scmp.eq.s32.totalorder %s16, 0
    %p69 = por %p67, %p68
    %s71 = sadd.s32 %s70, 1
    %p74 = scmp.eq.s32.totalorder %s10, 3
    %p75 = scmp.ne.s32.totalorder %s70, %s72
    %p76 = scmp.eq.s32.totalorder %s10, 0
    %p77 = por %p75, %p76
    %p78 = scmp.ne.s32.totalorder %s70, %s72
    %p79 = scmp.eq.s32.totalorder %s15, 3
    %p80 = por %p78, %p79
    %p81 = scmp.ne.s32.totalorder %s72, %s73
    %p82 = scmp.eq.s32.totalorder %s15, 0
    %p83 = por %p81, %p82
    %p84 = scmp.ne.s32.totalorder %s72, %s73
    %p85 = scmp.eq.s32.totalorder %s16, 3
    %p86 = por %p84, %p85
    %p88 = scmp.ne.s32.totalorder %s73, %s87
    %p89 = scmp.eq.s32.totalorder %s16, 0
    %p90 = por %p88, %p89
    %s92 = sadd.s32 %s91, 1
    %p95 = scmp.eq.s32.totalorder %s10, 3
    %p96 = scmp.ne.s32.totalorder %s91, %s93
    %p97 = scmp.eq.s32.totalorder %s10, 0
    %p98 = por %p96, %p97
    %p99 = scmp.ne.s32.totalorder %s91, %s93
    %p100 = scmp.eq.s32.totalorder %s15, 3
    %p101 = por %p99, %p100
    %p102 = scmp.ne.s32.totalorder %s93, %s94
    %p103 = scmp.eq.s32.totalorder %s15, 0
    %p104 = por %p102, %p103
    %p105 = scmp.ne.s32.totalorder %s93, %s94
    %p106 = scmp.eq.s32.totalorder %s16, 3
    %p107 = por %p105, %p106
    %p109 = scmp.ne.s32.totalorder %s94, %s108
    %p110 = scmp.eq.s32.totalorder %s16, 0
    %p111 = por %p109, %p110
    %s112 = ssub.s32 %s10, %s17
    %p113 = scmp.eq.s32.totalorder %s112, 0
    %s115 = sadd.s32 %s114, 1
    %s116 = scalar_select %p113, %s114, %s115
    %p119 = pneg %p113
    %p120 = scmp.eq.s32.totalorder %s10, 3
    %p121 = por %p119, %p120
    %p122 = scmp.ne.s32.totalorder %s114, %s117
    %p123 = scmp.eq.s32.totalorder %s10, 0
    %p124 = por %p122, %p123
    %p125 = scmp.ne.s32.totalorder %s114, %s117
    %p126 = scmp.eq.s32.totalorder %s15, 3
    %p127 = por %p125, %p126
    %p128 = scmp.ne.s32.totalorder %s117, %s118
    %p129 = scmp.eq.s32.totalorder %s15, 0
    %p130 = por %p128, %p129
    %p131 = scmp.ne.s32.totalorder %s117, %s118
    %p132 = scmp.eq.s32.totalorder %s16, 3
    %p133 = por %p131, %p132
    %p135 = scmp.ne.s32.totalorder %s118, %s134
    %p136 = scmp.eq.s32.totalorder %s16, 0
    %p137 = por %p135, %p136
    %p138 = scmp.le.s32.totalorder 1, %s10
    %p139 = scmp.lt.s32.totalorder %s10, 5
    %p140 = pnand %p138, %p139
    %p141 = pneg %p140
    // Predicated region
    $region9: #{tpu_custom_call.1} parent=5 // pred_check
      _
    $region10: #{tpu_custom_call.1} parent=5 // pred_check_branch
      %143 = sbr.rel (%p140) target = $region12
    $region11: #{tpu_custom_call.1} parent=5 // pred_region
      %s144 = ssub.s32 %s10, 1
      // Predicated region
      $region13: #{tpu_custom_call.1} parent=11 // pred_check
        %p145 = pneg %p83
      $region14: #{tpu_custom_call.1} parent=11 // pred_check_branch
        %147 = sbr.rel (%p145) target = $region16
      $region15: #{tpu_custom_call.1} parent=11 // pred_region
        _
      $region16: #{tpu_custom_call.1} parent=11 // pred_fallthru
        _
      // Predicated region
      $region17: #{tpu_custom_call.1} parent=11 // pred_check
        %p148 = pneg %p104
      $region18: #{tpu_custom_call.1} parent=11 // pred_check_branch
        %150 = sbr.rel (%p148) target = $region20
      $region19: #{tpu_custom_call.1} parent=11 // pred_region
        _
      $region20: #{tpu_custom_call.1} parent=11 // pred_fallthru
        _
    $region12: #{tpu_custom_call.1} parent=5 // pred_fallthru
      _
    %p151 = scmp.lt.s32.totalorder %s10, 4
    // Predicated region
    $region21: #{tpu_custom_call.1} parent=5 // pred_check
      %p152 = pneg %p151
    $region22: #{tpu_custom_call.1} parent=5 // pred_check_branch
      %154 = sbr.rel (%p152) target = $region24
    $region23: #{tpu_custom_call.1} parent=5 // pred_region
      // Predicated region
      $region25: #{tpu_custom_call.1} parent=23 // pred_check
        %p155 = pneg %p30
      $region26: #{tpu_custom_call.1} parent=23 // pred_check_branch
        %157 = sbr.rel (%p155) target = $region28
      $region27: #{tpu_custom_call.1} parent=23 // pred_region
        %p158 = scmp.lt.s32.totalorder %s10, 3
        %s159 = scalar_select %p158, %s10, 3
        %s160 = smul.addr %s159, 4
        %s161 = smul.addr %s160, 8
        %s162 = scalar_lea.vmem %s0, %s161
      $region28: #{tpu_custom_call.1} parent=23 // pred_fallthru
        _
      // Predicated region
      $region29: #{tpu_custom_call.1} parent=23 // pred_check
        %p163 = pneg %p56
      $region30: #{tpu_custom_call.1} parent=23 // pred_check_branch
        %165 = sbr.rel (%p163) target = $region32
      $region31: #{tpu_custom_call.1} parent=23 // pred_region
        %p166 = scmp.lt.s32.totalorder %s10, 3
        %s167 = scalar_select %p166, %s10, 3
        %s168 = scalar_lea.vmem %s1, %s167
      $region32: #{tpu_custom_call.1} parent=23 // pred_fallthru
        _
    $region24: #{tpu_custom_call.1} parent=5 // pred_fallthru
      _
    %p169 = scmp.le.s32.totalorder 1, %s10
    %p170 = scmp.lt.s32.totalorder %s10, 5
    %p171 = pnand %p169, %p170
    %p172 = pneg %p171
    // Predicated region
    $region33: #{tpu_custom_call.1} parent=5 // pred_check
      _
    $region34: #{tpu_custom_call.1} parent=5 // pred_check_branch
      %174 = sbr.rel (%p171) target = $region36
    $region35: #{tpu_custom_call.1} parent=5 // pred_region
      %s175 = ssub.s32 %s10, 1
      %p176 = scmp.lt.s32.totalorder %s15, 3
      %s177 = scalar_select %p176, %s15, 3
      %s178 = smul.addr %s177, 4
      %s179 = smul.addr %s178, 8
      %s180 = scalar_lea.vmem %s0, %s179
      %p181 = pneg %p36
      %p182 = pneg %p33
      %p183 = scmp.lt.s32.totalorder %s15, 3
      %s184 = scalar_select %p183, %s15, 3
      %s185 = scalar_lea.vmem %s1, %s184
      %p186 = pneg %p62
      %p187 = pneg %p59
      %p188 = pneg %p83
      %p189 = pneg %p80
      %p190 = pneg %p104
      %p191 = pneg %p101
      %p192 = pneg %p130
      %p193 = pneg %p127
      %p194 = scmp.lt.s32.totalorder %s15, 3
      %s195 = scalar_select %p194, %s15, 3
      %s196 = smul.addr %s195, 4
      %s197 = smul.addr %s196, 8
      %s198 = scalar_lea.vmem %s4, %s197
      %p199 = scmp.lt.s32.totalorder %s15, 3
      %s200 = scalar_select %p199, %s15, 3
      %s201 = smul.addr %s200, 4
      %s202 = smul.addr %s201, 8
      %s203 = scalar_lea.vmem %s0, %s202
      %p204 = scmp.lt.s32.totalorder %s15, 3
      %s205 = scalar_select %p204, %s15, 3
      %s206 = scalar_lea.vmem %s1, %s205
      %p207 = scmp.lt.s32.totalorder %s15, 3
      %s208 = scalar_select %p207, %s15, 3
      %s209 = smul.addr %s208, 4
      %s210 = smul.addr %s209, 8
      %s211 = scalar_lea.vmem %s4, %s210
      %v212 = vld [vmem:[%s203] sm:$0xff]
      %v213 = vld [vmem:[%s203 + $0x8] sm:$0xff]
      %v214 = vld [vmem:[%s203 + $0x10] sm:$0xff]
      %v215 = vld [vmem:[%s203 + $0x18] sm:$0xff]
      %vm216 = vcmask 130048
      %v217 = vsel %vm216, %v212, 0.0
      %218 = vadd.xlane.f32.xlu0 %v217
      %v219 = vpop.xlane.xlu0 %218
      %v220 = vsel %vm216, %v213, 0.0
      %221 = vadd.xlane.f32.xlu0 %v220
      %v222 = vpop.xlane.xlu0 %221
      %v223 = vsel %vm216, %v214, 0.0
      %224 = vadd.xlane.f32.xlu0 %v223
      %v225 = vpop.xlane.xlu0 %224
      %v226 = vsel %vm216, %v215, 0.0
      %227 = vadd.xlane.f32.xlu0 %v226
      %v228 = vpop.xlane.xlu0 %227
      %v229 = vadd.f32 %v219, 0.0
      %v230 = vadd.f32 %v222, 0.0
      %v231 = vadd.f32 %v225, 0.0
      %v232 = vadd.f32 %v228, 0.0
      %v233 = vld [vmem:[%s206] sm:$0x1]
      %235 = vset.pattern.permute.xlu0 0
      %236 = vperm.xlu0 %235, %v233
      %v237 = vpop.permute.xlu0 %236
      %v239 = vlaneseq
      %v240 = vshrl.u32 %v239, 7
      %v241 = vsub.s32 0, %v240
      %v242 = vrot.slane %v237, %v241
      %v243 = vmul.f32 %v229, %v242
      %v244 = vmul.f32 %v230, %v242
      %v245 = vmul.f32 %v231, %v242
      %v246 = vmul.f32 %v232, %v242
      %v247 = vld [vmem:[%s2] sm:$0xff]
      %v248 = vld [vmem:[%s2 + $0x8] sm:$0xff]
      %v249 = vld [vmem:[%s2 + $0x10] sm:$0xff]
      %v250 = vld [vmem:[%s2 + $0x18] sm:$0xff]
      %v251 = vld [vmem:[%s3] sm:$0x1]
      %v256 = vlaneseq
      %v257 = vand.u32 %v256, 127
      %v258 = vlaneseq
      %v259 = vshrl.u32 %v258, 7
      %v260 = vsub.s32 %v257, %v259
      %v261 = vrot.slane %v243, %v260
      %v262 = vadd.s32 %v257, 4294967288
      %v263 = vlaneseq
      %v264 = vshrl.u32 %v263, 7
      %v265 = vsub.s32 %v262, %v264
      %v266 = vrot.slane %v244, %v265
      %vm267 = vcmask 130112
      %v268 = vsel %vm267, %v266, %v261
      %v269 = vadd.s32 %v257, 4294967280
      %v270 = vlaneseq
      %v271 = vshrl.u32 %v270, 7
      %v272 = vsub.s32 %v269, %v271
      %v273 = vrot.slane %v245, %v272
      %vm274 = vcmask 195712
      %v275 = vsel %vm274, %v273, %v268
      %v276 = vadd.s32 %v257, 4294967272
      %v277 = vlaneseq
      %v278 = vshrl.u32 %v277, 7
      %v279 = vsub.s32 %v276, %v278
      %v280 = vrot.slane %v246, %v279
      %vm281 = vcmask 261312
      %v282 = vsel %vm281, %v280, %v275
      %vm283 = vcmask 261120
      %v284 = vsel %vm283, %v282, 0
      %286 = vmatprep.subr.mxu0 0.0
      %287 = vmatpush1.msra.mxu0 0.0
      %288 = vmatprep.subr.mxu0 0.0
      %289 = vmatpush1.msra.mxu0 0.0
      %290 = vmatprep.subr.mxu0 0.0
      %291 = vmatpush1.msra.mxu0 0.0
      %292 = vmatprep.subr.mxu0 0.0
      %293 = vmatpush1.msra.mxu0 0.0
      %294 = vmatprep.subr.mxu0 0.0
      %295 = vmatpush1.msra.mxu0 0.0
      %296 = vmatprep.subr.mxu0 0.0
      %297 = vmatpush1.msra.mxu0 0.0
      %298 = vmatprep.subr.mxu0 0.0
      %299 = vmatpush1.msra.mxu0 0.0
      %300 = vmatprep.subr.mxu0 0.0
      %301 = vmatpush1.msra.mxu0 0.0
      %302 = vmatprep.subr.mxu0 0.0
      %303 = vmatpush1.msra.mxu0 0.0
      %304 = vmatprep.subr.mxu0 0.0
      %305 = vmatpush1.msra.mxu0 0.0
      %306 = vmatprep.subr.mxu0 0.0
      %307 = vmatpush1.msra.mxu0 0.0
      %308 = vmatprep.subr.mxu0 0.0
      %309 = vmatpush1.msra.mxu0 0.0
      %310 = vmatprep.subr.mxu0 0.0
      %311 = vmatpush1.msra.mxu0 %v250
      %312 = vmatprep.subr.mxu0 0.0
      %313 = vmatpush1.msra.mxu0 %v249
      %314 = vmatprep.subr.mxu0 0.0
      %315 = vmatpush1.msra.mxu0 %v248
      %316 = vmatprep.subr.mxu0 0.0
      %317 = vmatpush1.msra.mxu0 %v247
      %318 = vmatprep.subr.mxu0 0.0
      %319 = vmatpush2.msra.mxu0 0.0
      %320 = vmatprep.subr.mxu0 0.0
      %321 = vmatpush2.msra.mxu0 0.0
      %322 = vmatprep.subr.mxu0 0.0
      %323 = vmatpush2.msra.mxu0 0.0
      %324 = vmatprep.subr.mxu0 0.0
      %325 = vmatpush2.msra.mxu0 0.0
      %326 = vmatprep.subr.mxu0 0.0
      %327 = vmatpush2.msra.mxu0 0.0
      %328 = vmatprep.subr.mxu0 0.0
      %329 = vmatpush2.msra.mxu0 0.0
      %330 = vmatprep.subr.mxu0 0.0
      %331 = vmatpush2.msra.mxu0 0.0
      %332 = vmatprep.subr.mxu0 0.0
      %333 = vmatpush2.msra.mxu0 0.0
      %334 = vmatprep.subr.mxu0 0.0
      %335 = vmatpush2.msra.mxu0 0.0
      %336 = vmatprep.subr.mxu0 0.0
      %337 = vmatpush2.msra.mxu0 0.0
      %338 = vmatprep.subr.mxu0 0.0
      %339 = vmatpush2.msra.mxu0 0.0
      %340 = vmatprep.subr.mxu0 0.0
      %341 = vmatpush2.msra.mxu0 0.0
      %342 = vmatprep.subr.mxu0 0.0
      %343 = vmatpush2.msra.mxu0 0.0
      %344 = vmatprep.subr.mxu0 0.0
      %345 = vmatpush2.msra.mxu0 0.0
      %346 = vmatprep.subr.mxu0 0.0
      %347 = vmatpush2.msra.mxu0 0.0
      %348 = vmatprep.subr.mxu0 0.0
      %349 = vmatpush2.msra.mxu0 0.0
      %350 = vmatprep.mubr.f32.mxu0 0.0
      %351 = vmatmul.mubr.f32.gmra.mxu0 %v284
      %v352 = vpop.f32.mrf.mxu0
      %v353 = vadd.f32 %v251, %v352
      %v354 = vpop.f32.mrf.mxu0
      %355 = vdwg.mxu0
      %v356 = vxor.u32 %v353, 2147483648
      %v357 = vmul.f32 %v356, 1.442695
      %v358 = vpow.pop %v357
      %v359 = vadd.f32 %v358, 1.0
      %v360 = vrcp.pop %v359
      %v361 = vmul.f32 1.0, %v360
      %v362 = vlaneseq
      %v363 = vshrl.u32 %v362, 7
      %v364 = vsub.s32 0, %v363
      %v365 = vrot.slane %v361, %v364
      %367 = vbcast.lane.b32.xlu0 %v365, 256
      %v368 = vpop.permute.xlu0 %367
      %s370 = sor.u32 256, 8
      %371 = vbcast.lane.b32.xlu0 %v365, %s370
      %v372 = vpop.permute.xlu0 %371
      %s374 = sor.u32 256, 16
      %375 = vbcast.lane.b32.xlu0 %v365, %s374
      %v376 = vpop.permute.xlu0 %375
      %s378 = sor.u32 256, 24
      %379 = vbcast.lane.b32.xlu0 %v365, %s378
      %v380 = vpop.permute.xlu0 %379
      %v381 = vmul.f32 %v212, %v368
      %v382 = vmul.f32 %v213, %v372
      %v383 = vmul.f32 %v214, %v376
      %v384 = vmul.f32 %v215, %v380
      %385 = vst.msk [vmem:[%s211] sm:$0xff] %vm216, %v381
      %386 = vst.msk [vmem:[%s211 + $0x8] sm:$0xff] %vm216, %v382
      %387 = vst.msk [vmem:[%s211 + $0x10] sm:$0xff] %vm216, %v383
      %388 = vst.msk [vmem:[%s211 + $0x18] sm:$0xff] %vm216, %v384
      %p389 = scmp.lt.s32.totalorder %s15, 3
      %s390 = scalar_select %p389, %s15, 3
      %s391 = smul.addr %s390, 4
      %s392 = smul.addr %s391, 8
      %s393 = scalar_lea.vmem %s4, %s392
      // Predicated region
      $region37: #{tpu_custom_call.1} parent=35 // pred_check
        %p394 = pneg %p127
      $region38: #{tpu_custom_call.1} parent=35 // pred_check_branch
        %396 = sbr.rel (%p394) target = $region40
      $region39: #{tpu_custom_call.1} parent=35 // pred_region
        _
      $region40: #{tpu_custom_call.1} parent=35 // pred_fallthru
        _
    $region36: #{tpu_custom_call.1} parent=5 // pred_fallthru
      _
    %p397 = scmp.le.s32.totalorder 2, %s10
    // Predicated region
    $region41: #{tpu_custom_call.1} parent=5 // pred_check
      %p398 = pneg %p397
    $region42: #{tpu_custom_call.1} parent=5 // pred_check_branch
      %400 = sbr.rel (%p398) target = $region44
    $region43: #{tpu_custom_call.1} parent=5 // pred_region
      %s401 = ssub.s32 %s10, 2
      // Predicated region
      $region45: #{tpu_custom_call.1} parent=43 // pred_check
        %p402 = pneg %p133
      $region46: #{tpu_custom_call.1} parent=43 // pred_check_branch
        %404 = sbr.rel (%p402) target = $region48
      $region47: #{tpu_custom_call.1} parent=43 // pred_region
        %p405 = scmp.lt.s32.totalorder %s16, 3
        %s406 = scalar_select %p405, %s16, 3
        %s407 = smul.addr %s406, 4
        %s408 = smul.addr %s407, 8
        %s409 = scalar_lea.vmem %s4, %s408
      $region48: #{tpu_custom_call.1} parent=43 // pred_fallthru
        _
    $region44: #{tpu_custom_call.1} parent=5 // pred_fallthru
      _
  $region6: #{tpu_custom_call.1} parent=0 // loop_footer
    %s14 = sadd.s32 1, %s10
  $region7: #{tpu_custom_call.1} parent=0 // loop_footer_branch
    %9 = sbr.rel target = $region3
  $region8: #{tpu_custom_call.1} parent=0 // loop_exit
    _

// kernel: tpu_custom_call.1
$region0: #{tpu_custom_call.1}
  #allocation0 [shape = 'u32[]', space=smem, size = 0x4, offset = 0x4, fixed_abs, tag = 'smem constant byte address 0x4 - core index']
  #allocation1 [shape = 'u32[144,128]{1,0:T(1,128)}', space=vmem, size = 0x12000, scoped, tag = 'internal scratch']
  %s0 = inlined_call_operand.vmem [shape: f32[4,32,16], index: 0, kind: input, shape index: {}]
  %s1 = inlined_call_operand.vmem [shape: f32[4,1,1], index: 1, kind: input, shape index: {}]
  %s2 = inlined_call_operand.vmem [shape: f32[32,32], index: 2, kind: input, shape index: {}]
  %s3 = inlined_call_operand.vmem [shape: f32[1,32], index: 3, kind: input, shape index: {}]
  %s4 = inlined_call_operand.vmem [shape: f32[4,32,16], index: 4, kind: output, shape index: {}]
  %s5 = sld [smem:[#allocation0]]
  $region49: #{tpu_custom_call.1} parent=0
    _
  %s7 = ssub.s32 1, %s5
  %s8 = scalar_select 0, %s7, %s5
  loop: start=0, step=1, limit=6
  $region2: #{tpu_custom_call.1} parent=0 // loop_pre_header
    _
  $region3: #{tpu_custom_call.1} parent=0 // loop_header
    %s10 = sphi 0, %s14
    %p11 = scmp.ge.s32.totalorder %s10, 6
    %s20 = sphi 0, %s22
    %s23 = sphi 0, %s20
    %s24 = sphi 0, %s23
    %s40 = sphi 0, %s24
    %s46 = sphi 0, %s48
    %s49 = sphi 0, %s46
    %s50 = sphi 0, %s49
    %s66 = sphi 0, %s50
    %s70 = sphi 0, %s70
    %s72 = sphi 0, %s70
    %s73 = sphi 0, %s72
    %s87 = sphi 0, %s73
    %s91 = sphi 0, %s91
    %s93 = sphi 0, %s91
    %s94 = sphi 0, %s93
    %s108 = sphi 0, %s94
    %s114 = sphi 0, %s116
    %s117 = sphi 0, %s114
    %s118 = sphi 0, %s117
    %s134 = sphi 0, %s118
  $region4: #{tpu_custom_call.1} parent=0 // loop_header_branch
    %13 = sbr.rel (%p11) target = $region8
  $region5: #{tpu_custom_call.1} parent=0 // loop_body
    %s15 = ssub.s32 %s10, 1
    %s16 = ssub.s32 %s10, 2
    %s17 = sadd.s32 %s10, 1
    %s18 = ssub.s32 %s10, %s17
    %p19 = scmp.eq.s32.totalorder %s18, 0
    %s21 = sadd.s32 %s20, 1
    %s22 = scalar_select %p19, %s20, %s21
    %p25 = pneg %p19
    %p26 = scmp.eq.s32.totalorder %s10, 3
    %p27 = por %p25, %p26
    %p28 = scmp.ne.s32.totalorder %s20, %s23
    %p29 = scmp.eq.s32.totalorder %s10, 0
    %p30 = por %p28, %p29
    %p31 = scmp.ne.s32.totalorder %s20, %s23
    %p32 = scmp.eq.s32.totalorder %s15, 3
    %p33 = por %p31, %p32
    %p34 = scmp.ne.s32.totalorder %s23, %s24
    %p35 = scmp.eq.s32.totalorder %s15, 0
    %p36 = por %p34, %p35
    %p37 = scmp.ne.s32.totalorder %s23, %s24
    %p38 = scmp.eq.s32.totalorder %s16, 3
    %p39 = por %p37, %p38
    %p41 = scmp.ne.s32.totalorder %s24, %s40
    %p42 = scmp.eq.s32.totalorder %s16, 0
    %p43 = por %p41, %p42
    %s44 = ssub.s32 %s10, %s17
    %p45 = scmp.eq.s32.totalorder %s44, 0
    %s47 = sadd.s32 %s46, 1
    %s48 = scalar_select %p45, %s46, %s47
    %p51 = pneg %p45
    %p52 = scmp.eq.s32.totalorder %s10, 3
    %p53 = por %p51, %p52
    %p54 = scmp.ne.s32.totalorder %s46, %s49
    %p55 = scmp.eq.s32.totalorder %s10, 0
    %p56 = por %p54, %p55
    %p57 = scmp.ne.s32.totalorder %s46, %s49
    %p58 = scmp.eq.s32.totalorder %s15, 3
    %p59 = por %p57, %p58
    %p60 = scmp.ne.s32.totalorder %s49, %s50
    %p61 = scmp.eq.s32.totalorder %s15, 0
    %p62 = por %p60, %p61
    %p63 = scmp.ne.s32.totalorder %s49, %s50
    %p64 = scmp.eq.s32.totalorder %s16, 3
    %p65 = por %p63, %p64
    %p67 = scmp.ne.s32.totalorder %s50, %s66
    %p68 = scmp.eq.s32.totalorder %s16, 0
    %p69 = por %p67, %p68
    %s71 = sadd.s32 %s70, 1
    %p74 = scmp.eq.s32.totalorder %s10, 3
    %p75 = scmp.ne.s32.totalorder %s70, %s72
    %p76 = scmp.eq.s32.totalorder %s10, 0
    %p77 = por %p75, %p76
    %p78 = scmp.ne.s32.totalorder %s70, %s72
    %p79 = scmp.eq.s32.totalorder %s15, 3
    %p80 = por %p78, %p79
    %p81 = scmp.ne.s32.totalorder %s72, %s73
    %p82 = scmp.eq.s32.totalorder %s15, 0
    %p83 = por %p81, %p82
    %p84 = scmp.ne.s32.totalorder %s72, %s73
    %p85 = scmp.eq.s32.totalorder %s16, 3
    %p86 = por %p84, %p85
    %p88 = scmp.ne.s32.totalorder %s73, %s87
    %p89 = scmp.eq.s32.totalorder %s16, 0
    %p90 = por %p88, %p89
    %s92 = sadd.s32 %s91, 1
    %p95 = scmp.eq.s32.totalorder %s10, 3
    %p96 = scmp.ne.s32.totalorder %s91, %s93
    %p97 = scmp.eq.s32.totalorder %s10, 0
    %p98 = por %p96, %p97
    %p99 = scmp.ne.s32.totalorder %s91, %s93
    %p100 = scmp.eq.s32.totalorder %s15, 3
    %p101 = por %p99, %p100
    %p102 = scmp.ne.s32.totalorder %s93, %s94
    %p103 = scmp.eq.s32.totalorder %s15, 0
    %p104 = por %p102, %p103
    %p105 = scmp.ne.s32.totalorder %s93, %s94
    %p106 = scmp.eq.s32.totalorder %s16, 3
    %p107 = por %p105, %p106
    %p109 = scmp.ne.s32.totalorder %s94, %s108
    %p110 = scmp.eq.s32.totalorder %s16, 0
    %p111 = por %p109, %p110
    %s112 = ssub.s32 %s10, %s17
    %p113 = scmp.eq.s32.totalorder %s112, 0
    %s115 = sadd.s32 %s114, 1
    %s116 = scalar_select %p113, %s114, %s115
    %p119 = pneg %p113
    %p120 = scmp.eq.s32.totalorder %s10, 3
    %p121 = por %p119, %p120
    %p122 = scmp.ne.s32.totalorder %s114, %s117
    %p123 = scmp.eq.s32.totalorder %s10, 0
    %p124 = por %p122, %p123
    %p125 = scmp.ne.s32.totalorder %s114, %s117
    %p126 = scmp.eq.s32.totalorder %s15, 3
    %p127 = por %p125, %p126
    %p128 = scmp.ne.s32.totalorder %s117, %s118
    %p129 = scmp.eq.s32.totalorder %s15, 0
    %p130 = por %p128, %p129
    %p131 = scmp.ne.s32.totalorder %s117, %s118
    %p132 = scmp.eq.s32.totalorder %s16, 3
    %p133 = por %p131, %p132
    %p135 = scmp.ne.s32.totalorder %s118, %s134
    %p136 = scmp.eq.s32.totalorder %s16, 0
    %p137 = por %p135, %p136
    %p138 = scmp.le.s32.totalorder 1, %s10
    %p139 = scmp.lt.s32.totalorder %s10, 5
    %p140 = pnand %p138, %p139
    %p141 = pneg %p140
    // Predicated region
    $region9: #{tpu_custom_call.1} parent=5 // pred_check
      _
    $region10: #{tpu_custom_call.1} parent=5 // pred_check_branch
      %143 = sbr.rel (%p140) target = $region12
    $region11: #{tpu_custom_call.1} parent=5 // pred_region
      %s144 = ssub.s32 %s10, 1
      // Predicated region
      $region13: #{tpu_custom_call.1} parent=11 // pred_check
        %p145 = pneg %p83
      $region14: #{tpu_custom_call.1} parent=11 // pred_check_branch
        %147 = sbr.rel (%p145) target = $region16
      $region15: #{tpu_custom_call.1} parent=11 // pred_region
        _
      $region16: #{tpu_custom_call.1} parent=11 // pred_fallthru
        _
      // Predicated region
      $region17: #{tpu_custom_call.1} parent=11 // pred_check
        %p148 = pneg %p104
      $region18: #{tpu_custom_call.1} parent=11 // pred_check_branch
        %150 = sbr.rel (%p148) target = $region20
      $region19: #{tpu_custom_call.1} parent=11 // pred_region
        _
      $region20: #{tpu_custom_call.1} parent=11 // pred_fallthru
        _
    $region12: #{tpu_custom_call.1} parent=5 // pred_fallthru
      _
    %p151 = scmp.lt.s32.totalorder %s10, 4
    // Predicated region
    $region21: #{tpu_custom_call.1} parent=5 // pred_check
      %p152 = pneg %p151
    $region22: #{tpu_custom_call.1} parent=5 // pred_check_branch
      %154 = sbr.rel (%p152) target = $region24
    $region23: #{tpu_custom_call.1} parent=5 // pred_region
      // Predicated region
      $region25: #{tpu_custom_call.1} parent=23 // pred_check
        %p155 = pneg %p30
      $region26: #{tpu_custom_call.1} parent=23 // pred_check_branch
        %157 = sbr.rel (%p155) target = $region28
      $region27: #{tpu_custom_call.1} parent=23 // pred_region
        %p158 = scmp.lt.s32.totalorder %s10, 3
        %s159 = scalar_select %p158, %s10, 3
        %s160 = smul.addr %s159, 4
        %s161 = smul.addr %s160, 8
        %s162 = scalar_lea.vmem %s0, %s161
      $region28: #{tpu_custom_call.1} parent=23 // pred_fallthru
        _
      // Predicated region
      $region29: #{tpu_custom_call.1} parent=23 // pred_check
        %p163 = pneg %p56
      $region30: #{tpu_custom_call.1} parent=23 // pred_check_branch
        %165 = sbr.rel (%p163) target = $region32
      $region31: #{tpu_custom_call.1} parent=23 // pred_region
        %p166 = scmp.lt.s32.totalorder %s10, 3
        %s167 = scalar_select %p166, %s10, 3
        %s168 = scalar_lea.vmem %s1, %s167
      $region32: #{tpu_custom_call.1} parent=23 // pred_fallthru
        _
    $region24: #{tpu_custom_call.1} parent=5 // pred_fallthru
      _
    %p169 = scmp.le.s32.totalorder 1, %s10
    %p170 = scmp.lt.s32.totalorder %s10, 5
    %p171 = pnand %p169, %p170
    %p172 = pneg %p171
    // Predicated region
    $region33: #{tpu_custom_call.1} parent=5 // pred_check
      _
    $region34: #{tpu_custom_call.1} parent=5 // pred_check_branch
      %174 = sbr.rel (%p171) target = $region36
    $region35: #{tpu_custom_call.1} parent=5 // pred_region
      %s175 = ssub.s32 %s10, 1
      %p176 = scmp.lt.s32.totalorder %s15, 3
      %s177 = scalar_select %p176, %s15, 3
      %s178 = smul.addr %s177, 4
      %s179 = smul.addr %s178, 8
      %s180 = scalar_lea.vmem %s0, %s179
      %p181 = pneg %p36
      %p182 = pneg %p33
      %p183 = scmp.lt.s32.totalorder %s15, 3
      %s184 = scalar_select %p183, %s15, 3
      %s185 = scalar_lea.vmem %s1, %s184
      %p186 = pneg %p62
      %p187 = pneg %p59
      %p188 = pneg %p83
      %p189 = pneg %p80
      %p190 = pneg %p104
      %p191 = pneg %p101
      %p192 = pneg %p130
      %p193 = pneg %p127
      %p194 = scmp.lt.s32.totalorder %s15, 3
      %s195 = scalar_select %p194, %s15, 3
      %s196 = smul.addr %s195, 4
      %s197 = smul.addr %s196, 8
      %s198 = scalar_lea.vmem %s4, %s197
      %p199 = scmp.lt.s32.totalorder %s15, 3
      %s200 = scalar_select %p199, %s15, 3
      %s201 = smul.addr %s200, 4
      %s202 = smul.addr %s201, 8
      %s203 = scalar_lea.vmem %s0, %s202
      %p204 = scmp.lt.s32.totalorder %s15, 3
      %s205 = scalar_select %p204, %s15, 3
      %s206 = scalar_lea.vmem %s1, %s205
      %p207 = scmp.lt.s32.totalorder %s15, 3
      %s208 = scalar_select %p207, %s15, 3
      %s209 = smul.addr %s208, 4
      %s210 = smul.addr %s209, 8
      %s211 = scalar_lea.vmem %s4, %s210
      %v212 = vld [vmem:[%s203] sm:$0xff]
      %v213 = vld [vmem:[%s203 + $0x8] sm:$0xff]
      %v214 = vld [vmem:[%s203 + $0x10] sm:$0xff]
      %v215 = vld [vmem:[%s203 + $0x18] sm:$0xff]
      %vm216 = vcmask 130048
      %v217 = vsel %vm216, %v212, 0.0
      %218 = vadd.xlane.f32.xlu0 %v217
      %v219 = vpop.xlane.xlu0 %218
      %v220 = vsel %vm216, %v213, 0.0
      %221 = vadd.xlane.f32.xlu0 %v220
      %v222 = vpop.xlane.xlu0 %221
      %v223 = vsel %vm216, %v214, 0.0
      %224 = vadd.xlane.f32.xlu0 %v223
      %v225 = vpop.xlane.xlu0 %224
      %v226 = vsel %vm216, %v215, 0.0
      %227 = vadd.xlane.f32.xlu0 %v226
      %v228 = vpop.xlane.xlu0 %227
      %v229 = vadd.f32 %v219, 0.0
      %v230 = vadd.f32 %v222, 0.0
      %v231 = vadd.f32 %v225, 0.0
      %v232 = vadd.f32 %v228, 0.0
      %v233 = vld [vmem:[%s206] sm:$0x1]
      %235 = vset.pattern.permute.xlu0 0
      %236 = vperm.xlu0 %235, %v233
      %v237 = vpop.permute.xlu0 %236
      %v239 = vlaneseq
      %v240 = vshrl.u32 %v239, 7
      %v241 = vsub.s32 0, %v240
      %v242 = vrot.slane %v237, %v241
      %v243 = vmul.f32 %v229, %v242
      %v244 = vmul.f32 %v230, %v242
      %v245 = vmul.f32 %v231, %v242
      %v246 = vmul.f32 %v232, %v242
      %v247 = vld [vmem:[%s2] sm:$0xff]
      %v248 = vld [vmem:[%s2 + $0x8] sm:$0xff]
      %v249 = vld [vmem:[%s2 + $0x10] sm:$0xff]
      %v250 = vld [vmem:[%s2 + $0x18] sm:$0xff]
      %v251 = vld [vmem:[%s3] sm:$0x1]
      %v256 = vlaneseq
      %v257 = vand.u32 %v256, 127
      %v258 = vlaneseq
      %v259 = vshrl.u32 %v258, 7
      %v260 = vsub.s32 %v257, %v259
      %v261 = vrot.slane %v243, %v260
      %v262 = vadd.s32 %v257, 4294967288
      %v263 = vlaneseq
      %v264 = vshrl.u32 %v263, 7
      %v265 = vsub.s32 %v262, %v264
      %v266 = vrot.slane %v244, %v265
      %vm267 = vcmask 130112
      %v268 = vsel %vm267, %v266, %v261
      %v269 = vadd.s32 %v257, 4294967280
      %v270 = vlaneseq
      %v271 = vshrl.u32 %v270, 7
      %v272 = vsub.s32 %v269, %v271
      %v273 = vrot.slane %v245, %v272
      %vm274 = vcmask 195712
      %v275 = vsel %vm274, %v273, %v268
      %v276 = vadd.s32 %v257, 4294967272
      %v277 = vlaneseq
      %v278 = vshrl.u32 %v277, 7
      %v279 = vsub.s32 %v276, %v278
      %v280 = vrot.slane %v246, %v279
      %vm281 = vcmask 261312
      %v282 = vsel %vm281, %v280, %v275
      %vm283 = vcmask 261120
      %v284 = vsel %vm283, %v282, 0
      %286 = vmatprep.subr.mxu0 0.0
      %287 = vmatpush1.msra.mxu0 0.0
      %288 = vmatprep.subr.mxu0 0.0
      %289 = vmatpush1.msra.mxu0 0.0
      %290 = vmatprep.subr.mxu0 0.0
      %291 = vmatpush1.msra.mxu0 0.0
      %292 = vmatprep.subr.mxu0 0.0
      %293 = vmatpush1.msra.mxu0 0.0
      %294 = vmatprep.subr.mxu0 0.0
      %295 = vmatpush1.msra.mxu0 0.0
      %296 = vmatprep.subr.mxu0 0.0
      %297 = vmatpush1.msra.mxu0 0.0
      %298 = vmatprep.subr.mxu0 0.0
      %299 = vmatpush1.msra.mxu0 0.0
      %300 = vmatprep.subr.mxu0 0.0
      %301 = vmatpush1.msra.mxu0 0.0
      %302 = vmatprep.subr.mxu0 0.0
      %303 = vmatpush1.msra.mxu0 0.0
      %304 = vmatprep.subr.mxu0 0.0
      %305 = vmatpush1.msra.mxu0 0.0
      %306 = vmatprep.subr.mxu0 0.0
      %307 = vmatpush1.msra.mxu0 0.0
      %308 = vmatprep.subr.mxu0 0.0
      %309 = vmatpush1.msra.mxu0 0.0
      %310 = vmatprep.subr.mxu0 0.0
      %311 = vmatpush1.msra.mxu0 %v250
      %312 = vmatprep.subr.mxu0 0.0
      %313 = vmatpush1.msra.mxu0 %v249
      %314 = vmatprep.subr.mxu0 0.0
      %315 = vmatpush1.msra.mxu0 %v248
      %316 = vmatprep.subr.mxu0 0.0
      %317 = vmatpush1.msra.mxu0 %v247
      %318 = vmatprep.subr.mxu0 0.0
      %319 = vmatpush2.msra.mxu0 0.0
      %320 = vmatprep.subr.mxu0 0.0
      %321 = vmatpush2.msra.mxu0 0.0
      %322 = vmatprep.subr.mxu0 0.0
      %323 = vmatpush2.msra.mxu0 0.0
      %324 = vmatprep.subr.mxu0 0.0
      %325 = vmatpush2.msra.mxu0 0.0
      %326 = vmatprep.subr.mxu0 0.0
      %327 = vmatpush2.msra.mxu0 0.0
      %328 = vmatprep.subr.mxu0 0.0
      %329 = vmatpush2.msra.mxu0 0.0
      %330 = vmatprep.subr.mxu0 0.0
      %331 = vmatpush2.msra.mxu0 0.0
      %332 = vmatprep.subr.mxu0 0.0
      %333 = vmatpush2.msra.mxu0 0.0
      %334 = vmatprep.subr.mxu0 0.0
      %335 = vmatpush2.msra.mxu0 0.0
      %336 = vmatprep.subr.mxu0 0.0
      %337 = vmatpush2.msra.mxu0 0.0
      %338 = vmatprep.subr.mxu0 0.0
      %339 = vmatpush2.msra.mxu0 0.0
      %340 = vmatprep.subr.mxu0 0.0
      %341 = vmatpush2.msra.mxu0 0.0
      %342 = vmatprep.subr.mxu0 0.0
      %343 = vmatpush2.msra.mxu0 0.0
      %344 = vmatprep.subr.mxu0 0.0
      %345 = vmatpush2.msra.mxu0 0.0
      %346 = vmatprep.subr.mxu0 0.0
      %347 = vmatpush2.msra.mxu0 0.0
      %348 = vmatprep.subr.mxu0 0.0
      %349 = vmatpush2.msra.mxu0 0.0
      %350 = vmatprep.mubr.f32.mxu0 0.0
      %351 = vmatmul.mubr.f32.gmra.mxu0 %v284
      %v352 = vpop.f32.mrf.mxu0
      %v353 = vadd.f32 %v251, %v352
      %v354 = vpop.f32.mrf.mxu0
      %355 = vdwg.mxu0
      %v356 = vxor.u32 %v353, 2147483648
      %v357 = vmul.f32 %v356, 1.442695
      %v358 = vpow.pop %v357
      %v359 = vadd.f32 %v358, 1.0
      %v360 = vrcp.pop %v359
      %v361 = vmul.f32 1.0, %v360
      %v362 = vlaneseq
      %v363 = vshrl.u32 %v362, 7
      %v364 = vsub.s32 0, %v363
      %v365 = vrot.slane %v361, %v364
      %367 = vbcast.lane.b32.xlu0 %v365, 256
      %v368 = vpop.permute.xlu0 %367
      %s370 = sor.u32 256, 8
      %371 = vbcast.lane.b32.xlu0 %v365, %s370
      %v372 = vpop.permute.xlu0 %371
      %s374 = sor.u32 256, 16
      %375 = vbcast.lane.b32.xlu0 %v365, %s374
      %v376 = vpop.permute.xlu0 %375
      %s378 = sor.u32 256, 24
      %379 = vbcast.lane.b32.xlu0 %v365, %s378
      %v380 = vpop.permute.xlu0 %379
      %v381 = vmul.f32 %v212, %v368
      %v382 = vmul.f32 %v213, %v372
      %v383 = vmul.f32 %v214, %v376
      %v384 = vmul.f32 %v215, %v380
      %385 = vst.msk [vmem:[%s211] sm:$0xff] %vm216, %v381
      %386 = vst.msk [vmem:[%s211 + $0x8] sm:$0xff] %vm216, %v382
      %387 = vst.msk [vmem:[%s211 + $0x10] sm:$0xff] %vm216, %v383
      %388 = vst.msk [vmem:[%s211 + $0x18] sm:$0xff] %vm216, %v384
      %p389 = scmp.lt.s32.totalorder %s15, 3
      %s390 = scalar_select %p389, %s15, 3
      %s391 = smul.addr %s390, 4
      %s392 = smul.addr %s391, 8
      %s393 = scalar_lea.vmem %s4, %s392
      // Predicated region
      $region37: #{tpu_custom_call.1} parent=35 // pred_check
        %p394 = pneg %p127
      $region38: #{tpu_custom_call.1} parent=35 // pred_check_branch
        %396 = sbr.rel (%p394) target = $region40
      $region39: #{tpu_custom_call.1} parent=35 // pred_region
        _
      $region40: #{tpu_custom_call.1} parent=35 // pred_fallthru
        _
    $region36: #{tpu_custom_call.1} parent=5 // pred_fallthru
      _
    %p397 = scmp.le.s32.totalorder 2, %s10
    // Predicated region
    $region41: #{tpu_custom_call.1} parent=5 // pred_check
      %p398 = pneg %p397
    $region42: #{tpu_custom_call.1} parent=5 // pred_check_branch
      %400 = sbr.rel (%p398) target = $region44
    $region43: #{tpu_custom_call.1} parent=5 // pred_region
      %s401 = ssub.s32 %s10, 2
      // Predicated region
      $region45: #{tpu_custom_call.1} parent=43 // pred_check
        %p402 = pneg %p133
      $region46: #{tpu_custom_call.1} parent=43 // pred_check_branch
        %404 = sbr.rel (%p402) target = $region48
      $region47: #{tpu_custom_call.1} parent=43 // pred_region
        %p405 = scmp.lt.s32.totalorder %s16, 3
        %s406 = scalar_select %p405, %s16, 3
        %s407 = smul.addr %s406, 4
        %s408 = smul.addr %s407, 8
        %s409 = scalar_lea.vmem %s4, %s408
      $region48: #{tpu_custom_call.1} parent=43 // pred_fallthru
        _
    $region44: #{tpu_custom_call.1} parent=5 // pred_fallthru
      _
  $region6: #{tpu_custom_call.1} parent=0 // loop_footer
    %s14 = sadd.s32 1, %s10
  $region7: #{tpu_custom_call.1} parent=0 // loop_footer_branch
    %9 = sbr.rel target = $region3
  $region8: #{tpu_custom_call.1} parent=0 // loop_exit
    _

</llo_original>
